<compile_context>
chip_gen: v5e
topology: v5e:2x2
jax: 0.10.0
libtpu: 0.0.40
codegen_flags: <defaults>
</compile_context>

<pallas_src>
import functools
import math

import jax
import jax.numpy as jnp
from jax.experimental import pallas as pl
from jax.experimental.pallas import tpu as pltpu


def _round_up(a, b):
    return (a + b - 1) // b * b


def add_cp_kernel(x_ref, o_ref, *, KC):
    # x_ref: (TM, N*C) VMEM tile, o_ref: (TM, (N+K)*C) VMEM tile.
    NC = x_ref.shape[1]
    # cyclic prefix: last K*C lanes of the input go first ...
    o_ref[:, :KC] = x_ref[:, NC - KC:]
    # ... followed by the full input.
    o_ref[:, KC:] = x_ref[:, :]


def add_cp(x, K, *, tm_max=2048, vmem_budget_bytes=16 * 1024 * 1024,
           min_pallas_bytes=1 << 20, force_pallas=False):
    """x: [..., N, C] -> [..., N+K, C]  (prepend last K rows along dim=-2)."""
    *lead, N, C = x.shape
    assert 0 < K <= N, f"cyclic-prefix length K={K} must satisfy 0 < K <= N={N}"

    M = math.prod(lead) if lead else 1
    NC = N * C            # folded input lane width   (e.g. 64*2 = 128)
    KC = K * C            # folded prefix lane width  (e.g. 16*2 = 32)
    OC = (N + K) * C      # folded output lane width  (e.g. 80*2 = 160)
    itemsize = jnp.dtype(x.dtype).itemsize

    # Degenerate empty input: nothing to copy, avoid an invalid BlockSpec.
    if M == 0:
        return jnp.zeros((*lead, N + K, C), dtype=x.dtype)

    # Small-size fast path: skip the pallas_call entirely; launch overhead
    # would be 100-1000x the copy itself at demo-scale shapes.
    total_bytes = M * (NC + OC) * itemsize
    if not force_pallas and total_bytes < min_pallas_bytes:
        return jnp.concatenate([x[..., -K:, :], x], axis=-2)

    # Fold (N, C) into a single contiguous lane axis -- free reshape.
    x_flat = x.reshape(M, NC)

    # dtype-aware sublane alignment: 8 rows (f32), 16 (bf16), 32 (int8).
    sub = max(8, 32 // itemsize)

    # VMEM footprint per row with lane-padded widths (output rows pad to a
    # multiple of 128 lanes in VMEM).
    bytes_per_row = (_round_up(NC, 128) + _round_up(OC, 128)) * itemsize

    # Largest sublane-aligned row tile whose double-buffered in+out footprint
    # fits the VMEM budget (safe against v5e 16 MiB scoped default).
    tm_fit = max(sub, (vmem_budget_bytes // (2 * bytes_per_row)) // sub * sub)
    TM = max(sub, min(_round_up(M, sub), tm_max, tm_fit))

    # Megacore (v7x): ensure >= 2 grid steps so both TensorCores are used,
    # and prefer an even grid so neither core eats an unbalanced tail.
    if TM >= M and M > sub:
        TM = _round_up(pl.cdiv(M, 2), sub)
    grid_m = pl.cdiv(M, TM)
    if grid_m > 1 and grid_m % 2 == 1:
        TM = max(sub, _round_up(pl.cdiv(M, grid_m + 1), sub))
        grid_m = pl.cdiv(M, TM)

    # Explicit VMEM limit: double-buffered in+out tiles + slack for the
    # compiler's internal scratch.
    vmem_limit = int(2 * TM * bytes_per_row) + (2 << 20)

    out_flat = pl.pallas_call(
        functools.partial(add_cp_kernel, KC=KC),
        out_shape=jax.ShapeDtypeStruct((M, OC), x.dtype),
        grid=(grid_m,),
        # Last block dims equal the full arrays' last dims (so the (8,128)
        # divisibility constraint is satisfied); TM is sublane-aligned.
        in_specs=[pl.BlockSpec((TM, NC), lambda i: (i, 0))],
        out_specs=pl.BlockSpec((TM, OC), lambda i: (i, 0)),
        compiler_params=pltpu.CompilerParams(
            dimension_semantics=("parallel",),
            vmem_limit_bytes=vmem_limit),
    )(x_flat)

    return out_flat.reshape(*lead, N + K, C)


if __name__ == "__main__":
    # opt.K (cyclic-prefix length) chosen deterministically in-script.
    K = 16
    B, S, N, C = 2, 4, 64, 2   # matches docstring's x[...].size() == [64, 2]

    key = jax.random.PRNGKey(0)
    x = jax.random.normal(key, (B, S, N, C), dtype=jnp.float32)
    ref = jnp.concatenate([x[..., -K:, :], x], axis=-2)

    # 1) Exercise the Pallas kernel itself on the small demo shape.
    out = jax.block_until_ready(add_cp(x, K, force_pallas=True))
    assert out.shape == (B, S, N + K, C), out.shape
    assert jnp.array_equal(out, ref), "pallas path mismatch vs reference"

    # 2) Default dispatch takes the small-size fast path (no pallas launch).
    out_fast = jax.block_until_ready(add_cp(x, K))
    assert jnp.array_equal(out_fast, ref), "fast path mismatch vs reference"

    # 3) A modestly larger input goes through Pallas naturally with >= 2
    #    (megacore-shardable) grid steps and a partial last block.
    x2 = jax.random.normal(jax.random.PRNGKey(0), (17, 64, N, C),
                           dtype=jnp.float32)
    out2 = jax.block_until_ready(add_cp(x2, K))
    ref2 = jnp.concatenate([x2[..., -K:, :], x2], axis=-2)
    assert jnp.array_equal(out2, ref2), "large-shape mismatch vs reference"

    print("KERNEL_OK")
</pallas_src>

<mosaic_0001>
module attributes {stable_mosaic.version = 11 : i64} {
  func.func @add_cp_kernel(%arg0: i32, %arg1: memref<8x128xf32, #tpu.memory_space<vmem>>, %arg2: memref<8x160xf32, #tpu.memory_space<vmem>>) attributes {dimension_semantics = [#tpu.dimension_semantics<parallel>], iteration_bounds = array<i64: 1>, scalar_prefetch = 0 : i64, scratch_operands = 0 : i64, tpu.core_type = #tpu.core_type<tc>, window_params = [{transform_indices = @transform_0, window_bounds = array<i64: 8, 128>}, {transform_indices = @transform_1, window_bounds = array<i64: 8, 160>}]} {
    %c0 = arith.constant 0 : index
    %c96 = arith.constant 96 : index
    %0 = vector.load %arg1[%c0, %c96] : memref<8x128xf32, #tpu.memory_space<vmem>>, vector<8x32xf32>
    %c0_0 = arith.constant 0 : index
    %c0_1 = arith.constant 0 : index
    %1 = vector.load %arg2[%c0_0, %c0_1] : memref<8x160xf32, #tpu.memory_space<vmem>>, vector<8x32xf32>
    tpu.vector_store %arg2[%c0_0, %c0_1], %0 {strides = array<i32>} : memref<8x160xf32, #tpu.memory_space<vmem>>, vector<8x32xf32>,
    %c0_2 = arith.constant 0 : index
    %c0_3 = arith.constant 0 : index
    %2 = vector.load %arg1[%c0_2, %c0_3] : memref<8x128xf32, #tpu.memory_space<vmem>>, vector<8x128xf32>
    %c0_4 = arith.constant 0 : index
    %c32 = arith.constant 32 : index
    %3 = vector.load %arg2[%c0_4, %c32] : memref<8x160xf32, #tpu.memory_space<vmem>>, vector<8x128xf32>
    tpu.vector_store %arg2[%c0_4, %c32], %2 {strides = array<i32>} : memref<8x160xf32, #tpu.memory_space<vmem>>, vector<8x128xf32>,
    return
  }
  func.func @transform_0(%arg0: i32) -> (i32, i32) {
    %c0_i32 = arith.constant 0 : i32
    %c0_i32_0 = arith.constant 0 : i32
    return %arg0, %c0_i32 : i32, i32
  }
  func.func @transform_1(%arg0: i32) -> (i32, i32) {
    %c0_i32 = arith.constant 0 : i32
    %c0_i32_0 = arith.constant 0 : i32
    return %arg0, %c0_i32 : i32, i32
  }
}

</mosaic_0001>

<llo_original>
// kernel: tpu_custom_call.1
$region0: #{tpu_custom_call.1}
  #allocation0 [shape = 'u32[]', space=smem, size = 0x4, offset = 0x4, fixed_abs, tag = 'smem constant byte address 0x4 - core index']
  #allocation1 [shape = 'u32[72,128]{1,0:T(1,128)}', space=vmem, size = 0x9000, scoped, tag = 'internal scratch']
  %s0 = inlined_call_operand.hbm [shape: f32[8,128], index: 0, kind: input, shape index: {}]
  %s1 = inlined_call_operand.hbm [shape: f32[8,160], index: 1, kind: output, shape index: {}]
  %s2 = sld [smem:[#allocation0]]
  $region18: #{tpu_custom_call.1} parent=0
    _
  %s4 = ssub.s32 1, %s2
  %s5 = scalar_select 0, %s4, %s2
  $region1: #{tpu_custom_call.1} parent=0
    #allocation2 [shape = 'u8[4096]{0}', space=vmem, size = 0x1000, scoped, tag = 'input window, operand 0, single buffered']
    #allocation3 [shape = 's32[1]{0}', space=sflag, size = 0x4, scoped, tag = 'scoped memory for tpu_custom_call.1']
    #allocation4 [shape = 's32[1]{0}', space=sflag, size = 0x4, scoped, tag = 'scoped memory for tpu_custom_call.1']
    #allocation5 [shape = 'u8[8192]{0}', space=vmem, size = 0x2000, scoped, tag = 'output window, operand 0, single buffered']
    %6 = vsyncpa [#allocation3], 0
    %7 = vsyncpa [#allocation4], 0
    // Predicated region
    $region2: #{tpu_custom_call.1} parent=1 // pred_check
      _
    $region3: #{tpu_custom_call.1} parent=1 // pred_check_branch
      %9 = sbr.rel (0) target = $region5
    $region4: #{tpu_custom_call.1} parent=1 // pred_region
      %11 = vsyncadd [#allocation3], 0
      %s13 = sshll.u32 %s0, 4
      %s14 = int_to_ptr.hbm [resolvable:$true] %s13
      %s15 = sshll.u32 [#allocation2], 4
      %s16 = int_to_ptr.vmem [resolvable:$true] %s15
      %18 = dma.hbm_to_vmem [thread:$0]  %s14, 128, %s16, [#allocation3]
    $region5: #{tpu_custom_call.1} parent=1 // pred_fallthru
      _
    // Predicated region
    $region6: #{tpu_custom_call.1} parent=1 // pred_check
      _
    $region7: #{tpu_custom_call.1} parent=1 // pred_check_branch
      %20 = sbr.rel (0) target = $region9
    $region8: #{tpu_custom_call.1} parent=1 // pred_region
      %22 = dma.done [#allocation3], 128
    $region9: #{tpu_custom_call.1} parent=1 // pred_fallthru
      _
    %v23 = vld [vmem:[#allocation2] sm:$0xff]
    %25 = vrot.lane.b32.xlu0 %v23, 32
    %v26 = vpop.permute.xlu0 %25
    %vm28 = vcmask 261120
    %29 = vst.msk [vmem:[#allocation5] sm:$0xff] %vm28, %v26
    %v30 = vld [vmem:[#allocation2] sm:$0xff]
    %32 = vrot.lane.b32.xlu0 %v30, 32
    %v33 = vpop.permute.xlu0 %32
    %vm35 = vcmask 1047808
    %36 = vst.msk [vmem:[#allocation5] sm:$0xff] %vm35, %v33
    %37 = vst.msk [vmem:[#allocation5 + $0x8] sm:$0xff] %vm28, %v33
    // Predicated region
    $region10: #{tpu_custom_call.1} parent=1 // pred_check
      _
    $region11: #{tpu_custom_call.1} parent=1 // pred_check_branch
      %39 = sbr.rel (0) target = $region13
    $region12: #{tpu_custom_call.1} parent=1 // pred_region
      %41 = vsyncadd [#allocation4], 0
      %s43 = sshll.u32 [#allocation5], 4
      %s44 = int_to_ptr.vmem [resolvable:$true] %s43
      %s45 = sshll.u32 %s1, 4
      %s46 = int_to_ptr.hbm [resolvable:$true] %s45
      %48 = dma.vmem_to_hbm [thread:$0]  %s44, 256, %s46, [#allocation4]
    $region13: #{tpu_custom_call.1} parent=1 // pred_fallthru
      _
    // Predicated region
    $region14: #{tpu_custom_call.1} parent=1 // pred_check
      _
    $region15: #{tpu_custom_call.1} parent=1 // pred_check_branch
      %50 = sbr.rel (0) target = $region17
    $region16: #{tpu_custom_call.1} parent=1 // pred_region
      %52 = dma.done [#allocation4], 256
    $region17: #{tpu_custom_call.1} parent=1 // pred_fallthru
      _
    %53 = vsyncpa [#allocation3], 1
    %54 = vsyncpa [#allocation4], 1

</llo_original>
